<compile_context>
chip_gen: v5e
topology: v5e:2x2
jax: 0.10.0
libtpu: 0.0.40
codegen_flags: <defaults>
</compile_context>

<pallas_src>
import functools

import jax
import jax.numpy as jnp
from jax.experimental import pallas as pl
from jax.experimental.pallas import tpu as pltpu


def _round_up(x, m):
    return (x + m - 1) // m * m


def maxout_mlp_kernel(x_ref, w1_ref, b1_ref, w2_ref, b2_ref, o_ref, *,
                      num_units, h_pad, c_pad):
    """Fused two-layer maxout MLP for one batch tile.

    x_ref : [TB, D]     input tile (fed to the MXU in its native dtype)
    w1_ref: [D, U*Hp]   fc1 weights, units concatenated along the lane axis
    b1_ref: [1, U*Hp]   fc1 biases (f32)
    w2_ref: [Hp, U*Cp]  fc2 weights, units concatenated along the lane axis
    b2_ref: [1, U*Cp]   fc2 biases (f32)
    o_ref : [TB, Cp]    lane-dense output tile (Cp % 128 == 0)
    """
    # ---- maxout layer 1: one MXU matmul over all units, then VPU max over
    #      the U contiguous 128-aligned lane slices --------------------------
    z1 = jnp.dot(x_ref[...], w1_ref[...],
                 preferred_element_type=jnp.float32) + b1_ref[...]
    h = z1[:, 0:h_pad]
    for u in range(1, num_units):
        h = jnp.maximum(h, z1[:, u * h_pad:(u + 1) * h_pad])

    # dropout: eval-mode identity (p only acts in training)

    # ---- maxout layer 2 -----------------------------------------------------
    z2 = jnp.dot(h.astype(w2_ref.dtype), w2_ref[...],
                 preferred_element_type=jnp.float32) + b2_ref[...]
    y = z2[:, 0:c_pad]
    for u in range(1, num_units):
        y = jnp.maximum(y, z2[:, u * c_pad:(u + 1) * c_pad])

    o_ref[...] = y.astype(o_ref.dtype)


def _choose_batch_tile(B, D, U, h_pad, c_pad, itemsize,
                       budget_bytes=40 * 1024 * 1024):
    """Largest batch tile (<=512, multiple of 8) that fits a conservative VMEM budget."""
    # resident weights/biases (assume 2x for double-buffered allocations)
    weight_bytes = 2 * (itemsize * (D * U * h_pad + h_pad * U * c_pad)
                        + 4 * (U * h_pad + U * c_pad))
    # per-row: double-buffered x/out tiles + live z1/h/z2/y f32 intermediates
    per_row = (itemsize * 2 * D
               + 4 * (2 * c_pad + U * h_pad + h_pad + U * c_pad + c_pad))
    tile = 512
    while tile > 8 and weight_bytes + tile * per_row > budget_bytes:
        tile //= 2
    return min(tile, _round_up(B, 8))


def maxout_forward(x, w1, b1, w2, b2, *, batch_tile=None, compute_dtype=None):
    """x: [B, D]; w1: [U, D, H]; b1: [U, H]; w2: [U, H, C]; b2: [U, C] -> [B, C]."""
    B, D = x.shape
    U, _, H = w1.shape
    C = w2.shape[-1]

    h_pad = _round_up(H, 128)
    c_pad = _round_up(C, 128)

    if compute_dtype is not None:  # e.g. jnp.bfloat16 on v6e/v7x
        x = x.astype(compute_dtype)
        w1 = w1.astype(compute_dtype)
        w2 = w2.astype(compute_dtype)

    # Pack weights: concatenate the U units along the output (lane) axis, pad
    # hidden/output widths to multiples of 128 for lane-dense slices/stores.
    # Zero padding is sound: padded hidden columns are 0 for every unit (so the
    # max over units is 0 there) and the matching padded rows of w2 are 0, so
    # they contribute nothing downstream; padded output columns are discarded.
    w1c = jnp.transpose(jnp.pad(w1, ((0, 0), (0, 0), (0, h_pad - H))),
                        (1, 0, 2)).reshape(D, U * h_pad)
    b1c = jnp.pad(b1, ((0, 0), (0, h_pad - H))).astype(jnp.float32).reshape(1, U * h_pad)
    w2c = jnp.transpose(jnp.pad(w2, ((0, 0), (0, h_pad - H), (0, c_pad - C))),
                        (1, 0, 2)).reshape(h_pad, U * c_pad)
    b2c = jnp.pad(b2, ((0, 0), (0, c_pad - C))).astype(jnp.float32).reshape(1, U * c_pad)

    itemsize = jnp.dtype(x.dtype).itemsize
    if batch_tile is None:
        batch_tile = _choose_batch_tile(B, D, U, h_pad, c_pad, itemsize)
    batch_tile = max(8, _round_up(batch_tile, 8))
    b_padded = _round_up(B, batch_tile)
    if b_padded != B:
        x = jnp.pad(x, ((0, b_padded - B), (0, 0)))

    kernel = functools.partial(maxout_mlp_kernel, num_units=U,
                               h_pad=h_pad, c_pad=c_pad)

    # Advisory cost of the real (unpadded) computation for XLA's scheduler.
    cost = pl.CostEstimate(
        flops=2 * B * U * (D * H + H * C),
        transcendentals=0,
        bytes_accessed=itemsize * (B * D + U * D * H + U * H * C + B * C)
        + 4 * (U * H + U * C),
    )

    # Explicit VMEM limit: conservative w.r.t. v7x's 64 MiB/TC ceiling.
    weight_bytes = (w1c.size + w2c.size) * itemsize + (b1c.size + b2c.size) * 4
    tile_bytes = batch_tile * (itemsize * 2 * D
                               + 4 * (2 * c_pad + U * h_pad + h_pad
                                      + U * c_pad + c_pad))
    vmem_limit = int(min(64 * 1024 * 1024,
                         max(32 * 1024 * 1024,
                             2 * weight_bytes + tile_bytes + (8 << 20))))

    y = pl.pallas_call(
        kernel,
        out_shape=jax.ShapeDtypeStruct((b_padded, c_pad), x.dtype),
        grid=(b_padded // batch_tile,),
        in_specs=[
            pl.BlockSpec((batch_tile, D), lambda i: (i, 0)),
            pl.BlockSpec((D, U * h_pad), lambda i: (0, 0)),
            pl.BlockSpec((1, U * h_pad), lambda i: (0, 0)),
            pl.BlockSpec((h_pad, U * c_pad), lambda i: (0, 0)),
            pl.BlockSpec((1, U * c_pad), lambda i: (0, 0)),
        ],
        out_specs=pl.BlockSpec((batch_tile, c_pad), lambda i: (i, 0)),
        compiler_params=pltpu.CompilerParams(
            dimension_semantics=("parallel",),
            vmem_limit_bytes=vmem_limit),
        cost_estimate=cost,
    )(x, w1c, b1c, w2c, b2c)

    return y[:B, :C]


def _init_params(key, D, C, num_units, neurons, out_dim):
    """Deterministic init matching MAXOUT.__init__ shapes.

    PyTorch Linear weight is [out, in]; we keep the transposed [in, out] layout.
    Weights: xavier_normal; biases: U(-1/sqrt(fan_in), 1/sqrt(fan_in)) (PyTorch default).
    """
    keys = jax.random.split(key, 4 * num_units)
    w1s, b1s, w2s, b2s = [], [], [], []
    for u in range(num_units):
        k_w1, k_b1, k_w2, k_b2 = keys[4 * u: 4 * u + 4]
        std1 = (2.0 / (D + neurons)) ** 0.5
        w1s.append(jax.random.normal(k_w1, (D, neurons), jnp.float32) * std1)
        bnd1 = 1.0 / (D ** 0.5)
        b1s.append(jax.random.uniform(k_b1, (neurons,), jnp.float32, -bnd1, bnd1))
        std2 = (2.0 / (neurons + out_dim)) ** 0.5
        w2s.append(jax.random.normal(k_w2, (neurons, out_dim), jnp.float32) * std2)
        bnd2 = 1.0 / (neurons ** 0.5)
        b2s.append(jax.random.uniform(k_b2, (out_dim,), jnp.float32, -bnd2, bnd2))
    return (jnp.stack(w1s), jnp.stack(b1s), jnp.stack(w2s), jnp.stack(b2s))


def _reference_forward(x, w1, b1, w2, b2):
    """Pure-JAX reference of the maxout forward (eval mode)."""
    h = jnp.max(jnp.einsum("bd,udh->ubh", x, w1) + b1[:, None, :], axis=0)
    y = jnp.max(jnp.einsum("bh,uhc->ubc", h, w2) + b2[:, None, :], axis=0)
    return y


if __name__ == "__main__":
    # Small shapes consistent with the module: D=32 input features, C=4 classes,
    # num_units=3 maxout pieces, neurons=64 hidden width, batch=8.
    B, D, C, num_units, neurons = 8, 32, 4, 3, 64
    out_dim = C

    key = jax.random.PRNGKey(0)
    k_x, k_p = jax.random.split(key)
    x = jax.random.normal(k_x, (B, D), jnp.float32)
    w1, b1, w2, b2 = _init_params(k_p, D, C, num_units, neurons, out_dim)

    y = maxout_forward(x, w1, b1, w2, b2)
    y = jax.block_until_ready(y)

    y_ref = _reference_forward(x, w1, b1, w2, b2)
    assert y.shape == (B, C)
    assert jnp.allclose(y, y_ref, atol=1e-4, rtol=1e-4), "mismatch vs reference"

    print("KERNEL_OK")
</pallas_src>

<mosaic_0001>
module attributes {stable_mosaic.version = 11 : i64} {
  func.func @maxout_mlp_kernel(%arg0: i32, %arg1: memref<8x32xf32, #tpu.memory_space<vmem>>, %arg2: memref<32x384xf32, #tpu.memory_space<vmem>>, %arg3: memref<1x384xf32, #tpu.memory_space<vmem>>, %arg4: memref<128x384xf32, #tpu.memory_space<vmem>>, %arg5: memref<1x384xf32, #tpu.memory_space<vmem>>, %arg6: memref<8x128xf32, #tpu.memory_space<vmem>>) attributes {dimension_semantics = [#tpu.dimension_semantics<parallel>], iteration_bounds = array<i64: 1>, scalar_prefetch = 0 : i64, scratch_operands = 0 : i64, tpu.core_type = #tpu.core_type<tc>, window_params = [{transform_indices = @transform_0, window_bounds = array<i64: 8, 32>}, {pipeline_mode = #tpu.pipeline_mode<synchronous>, transform_indices = @transform_1, window_bounds = array<i64: 32, 384>}, {pipeline_mode = #tpu.pipeline_mode<synchronous>, transform_indices = @transform_2, window_bounds = array<i64: 1, 384>}, {pipeline_mode = #tpu.pipeline_mode<synchronous>, transform_indices = @transform_3, window_bounds = array<i64: 128, 384>}, {pipeline_mode = #tpu.pipeline_mode<synchronous>, transform_indices = @transform_4, window_bounds = array<i64: 1, 384>}, {transform_indices = @transform_5, window_bounds = array<i64: 8, 128>}]} {
    %c0 = arith.constant 0 : index
    %c0_0 = arith.constant 0 : index
    %0 = vector.load %arg1[%c0, %c0_0] : memref<8x32xf32, #tpu.memory_space<vmem>>, vector<8x32xf32>
    %c0_1 = arith.constant 0 : index
    %c0_2 = arith.constant 0 : index
    %1 = vector.load %arg2[%c0_1, %c0_2] : memref<32x384xf32, #tpu.memory_space<vmem>>, vector<32x384xf32>
    %cst = arith.constant dense<0.000000e+00> : vector<8x384xf32>
    %2 = tpu.matmul %0, %1, %cst {dimension_numbers = #tpu.dot_dimension_numbers<[1], [0], [0], [1], [0, 0, 1, 1], [], []>} : vector<8x32xf32>, vector<32x384xf32>, vector<8x384xf32> -> vector<8x384xf32>
    %c0_3 = arith.constant 0 : index
    %c0_4 = arith.constant 0 : index
    %3 = vector.load %arg3[%c0_3, %c0_4] : memref<1x384xf32, #tpu.memory_space<vmem>>, vector<1x384xf32>
    %4 = vector.broadcast %3 : vector<1x384xf32> to vector<8x384xf32>
    %5 = arith.addf %2, %4 : vector<8x384xf32>
    %6 = vector.extract_strided_slice %5 {offsets = [0, 0], sizes = [8, 128], strides = [1, 1]} : vector<8x384xf32> to vector<8x128xf32>
    %7 = vector.extract_strided_slice %5 {offsets = [0, 128], sizes = [8, 128], strides = [1, 1]} : vector<8x384xf32> to vector<8x128xf32>
    %8 = arith.maximumf %6, %7 : vector<8x128xf32>
    %9 = vector.extract_strided_slice %5 {offsets = [0, 256], sizes = [8, 128], strides = [1, 1]} : vector<8x384xf32> to vector<8x128xf32>
    %10 = arith.maximumf %8, %9 : vector<8x128xf32>
    %c0_5 = arith.constant 0 : index
    %c0_6 = arith.constant 0 : index
    %11 = vector.load %arg4[%c0_5, %c0_6] : memref<128x384xf32, #tpu.memory_space<vmem>>, vector<128x384xf32>
    %cst_7 = arith.constant dense<0.000000e+00> : vector<8x384xf32>
    %12 = tpu.matmul %10, %11, %cst_7 {dimension_numbers = #tpu.dot_dimension_numbers<[1], [0], [0], [1], [0, 0, 1, 1], [], []>} : vector<8x128xf32>, vector<128x384xf32>, vector<8x384xf32> -> vector<8x384xf32>
    %c0_8 = arith.constant 0 : index
    %c0_9 = arith.constant 0 : index
    %13 = vector.load %arg5[%c0_8, %c0_9] : memref<1x384xf32, #tpu.memory_space<vmem>>, vector<1x384xf32>
    %14 = vector.broadcast %13 : vector<1x384xf32> to vector<8x384xf32>
    %15 = arith.addf %12, %14 : vector<8x384xf32>
    %16 = vector.extract_strided_slice %15 {offsets = [0, 0], sizes = [8, 128], strides = [1, 1]} : vector<8x384xf32> to vector<8x128xf32>
    %17 = vector.extract_strided_slice %15 {offsets = [0, 128], sizes = [8, 128], strides = [1, 1]} : vector<8x384xf32> to vector<8x128xf32>
    %18 = arith.maximumf %16, %17 : vector<8x128xf32>
    %19 = vector.extract_strided_slice %15 {offsets = [0, 256], sizes = [8, 128], strides = [1, 1]} : vector<8x384xf32> to vector<8x128xf32>
    %20 = arith.maximumf %18, %19 : vector<8x128xf32>
    %c0_10 = arith.constant 0 : index
    %c0_11 = arith.constant 0 : index
    %21 = vector.load %arg6[%c0_10, %c0_11] : memref<8x128xf32, #tpu.memory_space<vmem>>, vector<8x128xf32>
    tpu.vector_store %arg6[%c0_10, %c0_11], %20 {strides = array<i32>} : memref<8x128xf32, #tpu.memory_space<vmem>>, vector<8x128xf32>,
    return
  }
  func.func @transform_0(%arg0: i32) -> (i32, i32) {
    %c0_i32 = arith.constant 0 : i32
    %c0_i32_0 = arith.constant 0 : i32
    return %arg0, %c0_i32 : i32, i32
  }
  func.func @transform_1(%arg0: i32) -> (i32, i32) {
    %c0_i32 = arith.constant 0 : i32
    %c0_i32_0 = arith.constant 0 : i32
    %c0_i32_1 = arith.constant 0 : i32
    return %c0_i32, %c0_i32_0 : i32, i32
  }
  func.func @transform_2(%arg0: i32) -> (i32, i32) {
    %c0_i32 = arith.constant 0 : i32
    %c0_i32_0 = arith.constant 0 : i32
    %c0_i32_1 = arith.constant 0 : i32
    return %c0_i32, %c0_i32_0 : i32, i32
  }
  func.func @transform_3(%arg0: i32) -> (i32, i32) {
    %c0_i32 = arith.constant 0 : i32
    %c0_i32_0 = arith.constant 0 : i32
    %c0_i32_1 = arith.constant 0 : i32
    return %c0_i32, %c0_i32_0 : i32, i32
  }
  func.func @transform_4(%arg0: i32) -> (i32, i32) {
    %c0_i32 = arith.constant 0 : i32
    %c0_i32_0 = arith.constant 0 : i32
    %c0_i32_1 = arith.constant 0 : i32
    return %c0_i32, %c0_i32_0 : i32, i32
  }
  func.func @transform_5(%arg0: i32) -> (i32, i32) {
    %c0_i32 = arith.constant 0 : i32
    %c0_i32_0 = arith.constant 0 : i32
    return %arg0, %c0_i32 : i32, i32
  }
}

</mosaic_0001>

<llo_original>
// kernel: tpu_custom_call.1
$region0: #{tpu_custom_call.1}
  #allocation0 [shape = 'u32[]', space=smem, size = 0x4, offset = 0x4, fixed_abs, tag = 'smem constant byte address 0x4 - core index']
  #allocation1 [shape = 'u32[72,128]{1,0:T(1,128)}', space=vmem, size = 0x9000, scoped, tag = 'internal scratch']
  %s0 = inlined_call_operand.hbm [shape: f32[8,32], index: 0, kind: input, shape index: {}]
  %s1 = inlined_call_operand.hbm [shape: f32[32,384], index: 1, kind: input, shape index: {}]
  %s2 = inlined_call_operand.hbm [shape: f32[1,384], index: 2, kind: input, shape index: {}]
  %s3 = inlined_call_operand.hbm [shape: f32[128,384], index: 3, kind: input, shape index: {}]
  %s4 = inlined_call_operand.vmem [shape: f32[1,384], index: 4, kind: input, shape index: {}]
  %s5 = inlined_call_operand.hbm [shape: f32[8,128], index: 5, kind: output, shape index: {}]
  %s6 = sld [smem:[#allocation0]]
  $region46: #{tpu_custom_call.1} parent=0
    _
  %s8 = ssub.s32 1, %s6
  %s9 = scalar_select 0, %s8, %s6
  $region1: #{tpu_custom_call.1} parent=0
    #allocation2 [shape = 'u8[4096]{0}', space=vmem, size = 0x1000, scoped, tag = 'input window, operand 0, single buffered']
    #allocation3 [shape = 's32[1]{0}', space=sflag, size = 0x4, scoped, tag = 'scoped memory for tpu_custom_call.1']
    #allocation4 [shape = 's32[1]{0}', space=sflag, size = 0x4, scoped, tag = 'scoped memory for tpu_custom_call.1']
    #allocation5 [shape = 'u8[49152]{0}', space=vmem, size = 0xc000, scoped, tag = 'input window, operand 1, single buffered']
    #allocation6 [shape = 's32[1]{0}', space=sflag, size = 0x4, scoped, tag = 'scoped memory for tpu_custom_call.1']
    #allocation7 [shape = 'u8[1536]{0}', space=vmem, size = 0x800, scoped, tag = 'input window, operand 2, single buffered']
    #allocation8 [shape = 'u8[196608]{0}', space=vmem, size = 0x30000, scoped, tag = 'input window, operand 3, single buffered']
    #allocation9 [shape = 's32[1]{0}', space=sflag, size = 0x4, scoped, tag = 'scoped memory for tpu_custom_call.1']
    #allocation10 [shape = 'u8[4096]{0}', space=vmem, size = 0x1000, scoped, tag = 'output window, operand 0, single buffered']
    %10 = vsyncpa [#allocation3], 0
    %11 = vsyncpa [#allocation6], 0
    %12 = vsyncpa [#allocation9], 0
    %13 = vsyncpa [#allocation4], 0
    // Predicated region
    $region2: #{tpu_custom_call.1} parent=1 // pred_check
      _
    $region3: #{tpu_custom_call.1} parent=1 // pred_check_branch
      %15 = sbr.rel (0) target = $region5
    $region4: #{tpu_custom_call.1} parent=1 // pred_region
      %17 = vsyncadd [#allocation3], 0
      %s19 = sshll.u32 %s0, 4
      %s20 = int_to_ptr.hbm [resolvable:$true] %s19
      %s21 = sshll.u32 [#allocation2], 4
      %s22 = int_to_ptr.vmem [resolvable:$true] %s21
      %24 = dma.hbm_to_vmem [thread:$0]  %s20, 128, %s22, [#allocation3]
    $region5: #{tpu_custom_call.1} parent=1 // pred_fallthru
      _
    // Predicated region
    $region6: #{tpu_custom_call.1} parent=1 // pred_check
      _
    $region7: #{tpu_custom_call.1} parent=1 // pred_check_branch
      %26 = sbr.rel (0) target = $region9
    $region8: #{tpu_custom_call.1} parent=1 // pred_region
      %28 = vsyncadd [#allocation6], 0
      %s29 = sshll.u32 %s1, 4
      %s30 = int_to_ptr.hbm [resolvable:$true] %s29
      %s31 = sshll.u32 [#allocation5], 4
      %s32 = int_to_ptr.vmem [resolvable:$true] %s31
      %37 = dma.hbm_to_vmem [thread:$0]  %s30, 1536, %s32, [#allocation6], 384, 384, 24
    $region9: #{tpu_custom_call.1} parent=1 // pred_fallthru
      _
    // Predicated region
    $region10: #{tpu_custom_call.1} parent=1 // pred_check
      _
    $region11: #{tpu_custom_call.1} parent=1 // pred_check_branch
      %39 = sbr.rel (0) target = $region13
    $region12: #{tpu_custom_call.1} parent=1 // pred_region
      %41 = vsyncadd [#allocation6], 0
      %s43 = sshll.u32 %s2, 4
      %s44 = int_to_ptr.hbm [resolvable:$true] %s43
      %s45 = sshll.u32 [#allocation7], 4
      %s46 = int_to_ptr.vmem [resolvable:$true] %s45
      %48 = dma.hbm_to_vmem [thread:$0]  %s44, 48, %s46, [#allocation6]
    $region13: #{tpu_custom_call.1} parent=1 // pred_fallthru
      _
    // Predicated region
    $region14: #{tpu_custom_call.1} parent=1 // pred_check
      _
    $region15: #{tpu_custom_call.1} parent=1 // pred_check_branch
      %50 = sbr.rel (0) target = $region17
    $region16: #{tpu_custom_call.1} parent=1 // pred_region
      %52 = vsyncadd [#allocation9], 0
      %s53 = sshll.u32 %s3, 4
      %s54 = int_to_ptr.hbm [resolvable:$true] %s53
      %s55 = sshll.u32 [#allocation8], 4
      %s56 = int_to_ptr.vmem [resolvable:$true] %s55
      %61 = dma.hbm_to_vmem [thread:$0]  %s54, 6144, %s56, [#allocation9], 384, 384, 24
    $region17: #{tpu_custom_call.1} parent=1 // pred_fallthru
      _
    // Predicated region
    $region18: #{tpu_custom_call.1} parent=1 // pred_check
      _
    $region19: #{tpu_custom_call.1} parent=1 // pred_check_branch
      %63 = sbr.rel (0) target = $region21
    $region20: #{tpu_custom_call.1} parent=1 // pred_region
      _
    $region21: #{tpu_custom_call.1} parent=1 // pred_fallthru
      _
    // Predicated region
    $region22: #{tpu_custom_call.1} parent=1 // pred_check
      _
    $region23: #{tpu_custom_call.1} parent=1 // pred_check_branch
      %65 = sbr.rel (0) target = $region25
    $region24: #{tpu_custom_call.1} parent=1 // pred_region
      %67 = dma.done [#allocation3], 128
    $region25: #{tpu_custom_call.1} parent=1 // pred_fallthru
      _
    // Predicated region
    $region26: #{tpu_custom_call.1} parent=1 // pred_check
      _
    $region27: #{tpu_custom_call.1} parent=1 // pred_check_branch
      %69 = sbr.rel (0) target = $region29
    $region28: #{tpu_custom_call.1} parent=1 // pred_region
      %71 = dma.done [#allocation6], 1536
    $region29: #{tpu_custom_call.1} parent=1 // pred_fallthru
      _
    // Predicated region
    $region30: #{tpu_custom_call.1} parent=1 // pred_check
      _
    $region31: #{tpu_custom_call.1} parent=1 // pred_check_branch
      %73 = sbr.rel (0) target = $region33
    $region32: #{tpu_custom_call.1} parent=1 // pred_region
      %75 = dma.done [#allocation6], 48
    $region33: #{tpu_custom_call.1} parent=1 // pred_fallthru
      _
    // Predicated region
    $region34: #{tpu_custom_call.1} parent=1 // pred_check
      _
    $region35: #{tpu_custom_call.1} parent=1 // pred_check_branch
      %77 = sbr.rel (0) target = $region37
    $region36: #{tpu_custom_call.1} parent=1 // pred_region
      %79 = dma.done [#allocation9], 6144
    $region37: #{tpu_custom_call.1} parent=1 // pred_fallthru
      _
    %v80 = vld [vmem:[#allocation2] sm:$0xff]
    %v81 = vld [vmem:[#allocation5] sm:$0xff]
    %v82 = vld [vmem:[#allocation5 + $0x8] sm:$0xff]
    %v83 = vld [vmem:[#allocation5 + $0x10] sm:$0xff]
    %v84 = vld [vmem:[#allocation5 + $0x18] sm:$0xff]
    %v85 = vld [vmem:[#allocation5 + $0x20] sm:$0xff]
    %v86 = vld [vmem:[#allocation5 + $0x28] sm:$0xff]
    %v87 = vld [vmem:[#allocation5 + $0x30] sm:$0xff]
    %v88 = vld [vmem:[#allocation5 + $0x38] sm:$0xff]
    %v89 = vld [vmem:[#allocation5 + $0x40] sm:$0xff]
    %v90 = vld [vmem:[#allocation5 + $0x48] sm:$0xff]
    %v91 = vld [vmem:[#allocation5 + $0x50] sm:$0xff]
    %v92 = vld [vmem:[#allocation5 + $0x58] sm:$0xff]
    %v93 = vld [vmem:[#allocation7] sm:$0x7]
    %v95 = vperm.slane %v93, 0
    %v96 = vperm.slane %v93, 1
    %v97 = vperm.slane %v93, 2
    %vm101 = vcmask 261120
    %v103 = vsel %vm101, %v80, 0
    %105 = vmatpush.msra.mxu0 0.0
    %106 = vmatpush.msra.mxu0 0.0
    %107 = vmatpush.msra.mxu0 0.0
    %108 = vmatpush.msra.mxu0 0.0
    %109 = vmatpush.msra.mxu0 0.0
    %110 = vmatpush.msra.mxu0 0.0
    %111 = vmatpush.msra.mxu0 0.0
    %112 = vmatpush.msra.mxu0 0.0
    %113 = vmatpush.msra.mxu0 0.0
    %114 = vmatpush.msra.mxu0 0.0
    %115 = vmatpush.msra.mxu0 0.0
    %116 = vmatpush.msra.mxu0 0.0
    %117 = vmatpush.msra.mxu0 %v90
    %118 = vmatpush.msra.mxu0 %v87
    %119 = vmatpush.msra.mxu0 %v84
    %120 = vmatpush.msra.mxu0 %v81
    %121 = vmatmul.f32.gmra.mxu0 %v103
    %v122 = vpop.f32.mrf.mxu0
    %v123 = vadd.f32 %v95, %v122
    %124 = vdwg.mxu0
    %125 = vmatpush.msra.mxu0 0.0
    %126 = vmatpush.msra.mxu0 0.0
    %127 = vmatpush.msra.mxu0 0.0
    %128 = vmatpush.msra.mxu0 0.0
    %129 = vmatpush.msra.mxu0 0.0
    %130 = vmatpush.msra.mxu0 0.0
    %131 = vmatpush.msra.mxu0 0.0
    %132 = vmatpush.msra.mxu0 0.0
    %133 = vmatpush.msra.mxu0 0.0
    %134 = vmatpush.msra.mxu0 0.0
    %135 = vmatpush.msra.mxu0 0.0
    %136 = vmatpush.msra.mxu0 0.0
    %137 = vmatpush.msra.mxu0 %v91
    %138 = vmatpush.msra.mxu0 %v88
    %139 = vmatpush.msra.mxu0 %v85
    %140 = vmatpush.msra.mxu0 %v82
    %141 = vmatmul.f32.gmra.mxu0 %v103
    %v142 = vpop.f32.mrf.mxu0
    %v143 = vadd.f32 %v96, %v142
    %144 = vdwg.mxu0
    %145 = vmatpush.msra.mxu0 0.0
    %146 = vmatpush.msra.mxu0 0.0
    %147 = vmatpush.msra.mxu0 0.0
    %148 = vmatpush.msra.mxu0 0.0
    %149 = vmatpush.msra.mxu0 0.0
    %150 = vmatpush.msra.mxu0 0.0
    %151 = vmatpush.msra.mxu0 0.0
    %152 = vmatpush.msra.mxu0 0.0
    %153 = vmatpush.msra.mxu0 0.0
    %154 = vmatpush.msra.mxu0 0.0
    %155 = vmatpush.msra.mxu0 0.0
    %156 = vmatpush.msra.mxu0 0.0
    %157 = vmatpush.msra.mxu0 %v92
    %158 = vmatpush.msra.mxu0 %v89
    %159 = vmatpush.msra.mxu0 %v86
    %160 = vmatpush.msra.mxu0 %v83
    %161 = vmatmul.f32.gmra.mxu0 %v103
    %v162 = vpop.f32.mrf.mxu0
    %v163 = vadd.f32 %v97, %v162
    %164 = vdwg.mxu0
    %v165 = vmax.f32 %v123, %v143
    %v166 = vmax.f32 %v165, %v163
    %v167 = vld [vmem:[#allocation8] sm:$0xff]
    %v168 = vld [vmem:[#allocation8 + $0x8] sm:$0xff]
    %v169 = vld [vmem:[#allocation8 + $0x10] sm:$0xff]
    %v170 = vld [vmem:[#allocation8 + $0x18] sm:$0xff]
    %v171 = vld [vmem:[#allocation8 + $0x20] sm:$0xff]
    %v172 = vld [vmem:[#allocation8 + $0x28] sm:$0xff]
    %v173 = vld [vmem:[#allocation8 + $0x30] sm:$0xff]
    %v174 = vld [vmem:[#allocation8 + $0x38] sm:$0xff]
    %v175 = vld [vmem:[#allocation8 + $0x40] sm:$0xff]
    %v176 = vld [vmem:[#allocation8 + $0x48] sm:$0xff]
    %v177 = vld [vmem:[#allocation8 + $0x50] sm:$0xff]
    %v178 = vld [vmem:[#allocation8 + $0x58] sm:$0xff]
    %v179 = vld [vmem:[#allocation8 + $0x60] sm:$0xff]
    %v180 = vld [vmem:[#allocation8 + $0x68] sm:$0xff]
    %v181 = vld [vmem:[#allocation8 + $0x70] sm:$0xff]
    %v182 = vld [vmem:[#allocation8 + $0x78] sm:$0xff]
    %v183 = vld [vmem:[#allocation8 + $0x80] sm:$0xff]
    %v184 = vld [vmem:[#allocation8 + $0x88] sm:$0xff]
    %v185 = vld [vmem:[#allocation8 + $0x90] sm:$0xff]
    %v186 = vld [vmem:[#allocation8 + $0x98] sm:$0xff]
    %v187 = vld [vmem:[#allocation8 + $0xa0] sm:$0xff]
    %v188 = vld [vmem:[#allocation8 + $0xa8] sm:$0xff]
    %v189 = vld [vmem:[#allocation8 + $0xb0] sm:$0xff]
    %v190 = vld [vmem:[#allocation8 + $0xb8] sm:$0xff]
    %v191 = vld [vmem:[#allocation8 + $0xc0] sm:$0xff]
    %v192 = vld [vmem:[#allocation8 + $0xc8] sm:$0xff]
    %v193 = vld [vmem:[#allocation8 + $0xd0] sm:$0xff]
    %v194 = vld [vmem:[#allocation8 + $0xd8] sm:$0xff]
    %v195 = vld [vmem:[#allocation8 + $0xe0] sm:$0xff]
    %v196 = vld [vmem:[#allocation8 + $0xe8] sm:$0xff]
    %v197 = vld [vmem:[#allocation8 + $0xf0] sm:$0xff]
    %v198 = vld [vmem:[#allocation8 + $0xf8] sm:$0xff]
    %v199 = vld [vmem:[#allocation8 + $0x100] sm:$0xff]
    %v200 = vld [vmem:[#allocation8 + $0x108] sm:$0xff]
    %v201 = vld [vmem:[#allocation8 + $0x110] sm:$0xff]
    %v202 = vld [vmem:[#allocation8 + $0x118] sm:$0xff]
    %v203 = vld [vmem:[#allocation8 + $0x120] sm:$0xff]
    %v204 = vld [vmem:[#allocation8 + $0x128] sm:$0xff]
    %v205 = vld [vmem:[#allocation8 + $0x130] sm:$0xff]
    %v206 = vld [vmem:[#allocation8 + $0x138] sm:$0xff]
    %v207 = vld [vmem:[#allocation8 + $0x140] sm:$0xff]
    %v208 = vld [vmem:[#allocation8 + $0x148] sm:$0xff]
    %v209 = vld [vmem:[#allocation8 + $0x150] sm:$0xff]
    %v210 = vld [vmem:[#allocation8 + $0x158] sm:$0xff]
    %v211 = vld [vmem:[#allocation8 + $0x160] sm:$0xff]
    %v212 = vld [vmem:[#allocation8 + $0x168] sm:$0xff]
    %v213 = vld [vmem:[#allocation8 + $0x170] sm:$0xff]
    %v214 = vld [vmem:[#allocation8 + $0x178] sm:$0xff]
    %v215 = vld [vmem:[%s4] sm:$0x7]
    %v217 = vperm.slane %v215, 0
    %v218 = vperm.slane %v215, 1
    %v219 = vperm.slane %v215, 2
    %223 = vmatpush.msra.mxu0 %v212
    %224 = vmatpush.msra.mxu0 %v209
    %225 = vmatpush.msra.mxu0 %v206
    %226 = vmatpush.msra.mxu0 %v203
    %227 = vmatpush.msra.mxu0 %v200
    %228 = vmatpush.msra.mxu0 %v197
    %229 = vmatpush.msra.mxu0 %v194
    %230 = vmatpush.msra.mxu0 %v191
    %231 = vmatpush.msra.mxu0 %v188
    %232 = vmatpush.msra.mxu0 %v185
    %233 = vmatpush.msra.mxu0 %v182
    %234 = vmatpush.msra.mxu0 %v179
    %235 = vmatpush.msra.mxu0 %v176
    %236 = vmatpush.msra.mxu0 %v173
    %237 = vmatpush.msra.mxu0 %v170
    %238 = vmatpush.msra.mxu0 %v167
    %239 = vmatmul.f32.gmra.mxu0 %v166
    %v240 = vpop.f32.mrf.mxu0
    %v241 = vadd.f32 %v217, %v240
    %242 = vdwg.mxu0
    %243 = vmatpush.msra.mxu0 %v213
    %244 = vmatpush.msra.mxu0 %v210
    %245 = vmatpush.msra.mxu0 %v207
    %246 = vmatpush.msra.mxu0 %v204
    %247 = vmatpush.msra.mxu0 %v201
    %248 = vmatpush.msra.mxu0 %v198
    %249 = vmatpush.msra.mxu0 %v195
    %250 = vmatpush.msra.mxu0 %v192
    %251 = vmatpush.msra.mxu0 %v189
    %252 = vmatpush.msra.mxu0 %v186
    %253 = vmatpush.msra.mxu0 %v183
    %254 = vmatpush.msra.mxu0 %v180
    %255 = vmatpush.msra.mxu0 %v177
    %256 = vmatpush.msra.mxu0 %v174
    %257 = vmatpush.msra.mxu0 %v171
    %258 = vmatpush.msra.mxu0 %v168
    %259 = vmatmul.f32.gmra.mxu0 %v166
    %v260 = vpop.f32.mrf.mxu0
    %v261 = vadd.f32 %v218, %v260
    %262 = vdwg.mxu0
    %263 = vmatpush.msra.mxu0 %v214
    %264 = vmatpush.msra.mxu0 %v211
    %265 = vmatpush.msra.mxu0 %v208
    %266 = vmatpush.msra.mxu0 %v205
    %267 = vmatpush.msra.mxu0 %v202
    %268 = vmatpush.msra.mxu0 %v199
    %269 = vmatpush.msra.mxu0 %v196
    %270 = vmatpush.msra.mxu0 %v193
    %271 = vmatpush.msra.mxu0 %v190
    %272 = vmatpush.msra.mxu0 %v187
    %273 = vmatpush.msra.mxu0 %v184
    %274 = vmatpush.msra.mxu0 %v181
    %275 = vmatpush.msra.mxu0 %v178
    %276 = vmatpush.msra.mxu0 %v175
    %277 = vmatpush.msra.mxu0 %v172
    %278 = vmatpush.msra.mxu0 %v169
    %279 = vmatmul.f32.gmra.mxu0 %v166
    %v280 = vpop.f32.mrf.mxu0
    %v281 = vadd.f32 %v219, %v280
    %282 = vdwg.mxu0
    %v283 = vmax.f32 %v241, %v261
    %v284 = vmax.f32 %v283, %v281
    %285 = vst [vmem:[#allocation10] sm:$0xff] %v284
    // Predicated region
    $region38: #{tpu_custom_call.1} parent=1 // pred_check
      _
    $region39: #{tpu_custom_call.1} parent=1 // pred_check_branch
      %287 = sbr.rel (0) target = $region41
    $region40: #{tpu_custom_call.1} parent=1 // pred_region
      %289 = vsyncadd [#allocation4], 0
      %s291 = sshll.u32 [#allocation10], 4
      %s292 = int_to_ptr.vmem [resolvable:$true] %s291
      %s293 = sshll.u32 %s5, 4
      %s294 = int_to_ptr.hbm [resolvable:$true] %s293
      %296 = dma.vmem_to_hbm [thread:$0]  %s292, 128, %s294, [#allocation4]
    $region41: #{tpu_custom_call.1} parent=1 // pred_fallthru
      _
    // Predicated region
    $region42: #{tpu_custom_call.1} parent=1 // pred_check
      _
    $region43: #{tpu_custom_call.1} parent=1 // pred_check_branch
      %298 = sbr.rel (0) target = $region45
    $region44: #{tpu_custom_call.1} parent=1 // pred_region
      %300 = dma.done [#allocation4], 128
    $region45: #{tpu_custom_call.1} parent=1 // pred_fallthru
      _
    %301 = vsyncpa [#allocation3], 1
    %302 = vsyncpa [#allocation6], 1
    %303 = vsyncpa [#allocation9], 1
    %304 = vsyncpa [#allocation4], 1

</llo_original>
